<compile_context>
chip_gen: v5e
topology: v5e:2x2
jax: 0.10.0
libtpu: 0.0.40
codegen_flags: <defaults>
</compile_context>

<pallas_src>
import functools

import jax
import jax.numpy as jnp
from jax.experimental import pallas as pl
from jax.experimental.pallas import tpu as pltpu


def rir_kernel(x_ref, wse_ref, wfc2_ref, out_ref, *, BT, C, n1, n2, n3):
    HW = x_ref.shape[-1]
    x = x_ref[...]                                   # (BT*C, HW)
    xf = x.astype(jnp.float32)                       # accumulate in f32

    # Region masks over the flattened-spatial (lane) axis.
    pos = jax.lax.broadcasted_iota(jnp.int32, (1, HW), 1)
    in_r1 = pos < n1
    in_r12 = pos < (n1 + n2)

    # Fused 3-region average pool: one VPU multiply + one XLU lane reduce.
    w_pos = jnp.where(in_r1, jnp.float32(1.0 / n1),
                      jnp.where(in_r12, jnp.float32(1.0 / n2),
                                jnp.float32(1.0 / n3)))            # (1, HW)
    y = jnp.sum(xf * w_pos, axis=1, keepdims=True)                 # (BT*C, 1)

    wse = wse_ref[...]                               # (d, C)
    wfc2 = wfc2_ref[...]                             # (3C, d)

    # Tiny per-batch SE -> fc2 -> 3-way softmax (static unroll, BT is small).
    a_cols, b_cols, c_cols = [], [], []
    for t in range(BT):
        y_t = y[t * C:(t + 1) * C, :]                              # (C, 1)
        z_t = jnp.maximum(
            jnp.dot(wse, y_t, preferred_element_type=jnp.float32), 0.0)   # (d, 1)
        abc = jnp.dot(wfc2, z_t, preferred_element_type=jnp.float32)      # (3C, 1)
        la = abc[0:C, :]
        lb = abc[C:2 * C, :]
        lc = abc[2 * C:3 * C, :]
        m = jnp.maximum(jnp.maximum(la, lb), lc)
        ea = jnp.exp(la - m)
        eb = jnp.exp(lb - m)
        ec = jnp.exp(lc - m)
        inv = pl.reciprocal(ea + eb + ec, approx=True)   # EUP; ~1e-4 rel. err.
        a_cols.append(ea * inv)
        b_cols.append(eb * inv)
        c_cols.append(ec * inv)

    a = jnp.concatenate(a_cols, axis=0)              # (BT*C, 1)
    b = jnp.concatenate(b_cols, axis=0)
    c = jnp.concatenate(c_cols, axis=0)

    # Fused per-region scaling: one full-width (lane-dense) select+mul+store.
    scale = jnp.where(in_r1, a, jnp.where(in_r12, b, c))           # (BT*C, HW)
    out_ref[...] = (scale * xf).astype(out_ref.dtype)


def _pick_batch_tile(B, C, HW, itemsize=4, max_block_bytes=2 << 20, max_unroll=8):
    """Largest BT with BT | B, (BT*C, HW) obeying the (8,*) sublane rule,
    a modest per-block VMEM budget, and a bounded in-kernel unroll."""
    per_b = C * HW * itemsize
    candidates = []
    for bt in range(1, B + 1):
        if B % bt:
            continue
        rows_ok = (bt * C) % 8 == 0 or bt == B
        fits = bt * per_b <= max_block_bytes or bt == 1
        if rows_ok and fits and bt <= max_unroll:
            candidates.append(bt)
    if candidates:
        return max(candidates)
    for bt in range(1, B + 1):           # fallback: smallest layout-legal tile
        if B % bt == 0 and (bt * C) % 8 == 0:
            return bt
    return B


def rir_forward(x, w_se, w_fc2, M=3):
    """x: (B, C, H, W); w_se: (d, C, 1, 1); w_fc2: (M*C, d, 1, 1)."""
    B, C, H, W = x.shape
    assert M == 3, "kernel implements the M=3 height split of the module"
    assert H >= 3, "need at least 3 rows to form the three height regions"
    d = w_se.shape[0]
    out_channels = w_fc2.shape[0]
    assert out_channels == M * C, \
        "broadcast in a*x1 requires out_channels == M * in_channels"

    h1 = H // 3
    h2 = H * 2 // 3 - h1
    n1 = h1 * W
    n2 = h2 * W
    n3 = H * W - n1 - n2
    HW = H * W

    x2d = x.reshape(B * C, HW)
    wse = w_se.reshape(d, C)                  # natural (d, C) layout
    wfc2 = w_fc2.reshape(out_channels, d)     # natural (3C, d) layout

    BT = _pick_batch_tile(B, C, HW, itemsize=x.dtype.itemsize)
    rows = BT * C
    grid = (B // BT,)

    # TODO(synk): for per-batch slabs larger than the VMEM budget, switch to a
    # two-pass structure (pass 1: pooled sums + softmax weights; pass 2: tiled
    # lane-dense scaling with scalar-prefetched weights).

    kernel = functools.partial(rir_kernel, BT=BT, C=C, n1=n1, n2=n2, n3=n3)
    out2d = pl.pallas_call(
        kernel,
        out_shape=jax.ShapeDtypeStruct((B * C, HW), x.dtype),
        grid=grid,
        in_specs=[
            pl.BlockSpec((rows, HW), lambda i: (i, 0)),
            pl.BlockSpec((d, C), lambda i: (0, 0)),
            pl.BlockSpec((out_channels, d), lambda i: (0, 0)),
        ],
        out_specs=pl.BlockSpec((rows, HW), lambda i: (i, 0)),
        compiler_params=pltpu.CompilerParams(
            dimension_semantics=("parallel",)),
    )(x2d, wse, wfc2)
    return out2d.reshape(B, C, H, W)


def rir_reference(x, w_se, w_fc2, M=3):
    """Pure-JAX reference mirroring the PyTorch forward (sanity check)."""
    B, C, H, W = x.shape
    x1 = x[:, :, :H // 3, :]
    x2 = x[:, :, H // 3:H * 2 // 3, :]
    x3 = x[:, :, H * 2 // 3:, :]
    pool = lambda t: jnp.mean(t, axis=(2, 3))
    y = pool(x1) + pool(x2) + pool(x3)                       # (B, C)
    d = w_se.shape[0]
    out_channels = w_fc2.shape[0]
    z = jnp.maximum(y @ w_se.reshape(d, C).T, 0.0)           # (B, d)
    abc = z @ w_fc2.reshape(out_channels, d).T               # (B, 3C)
    abc = abc.reshape(B, M, out_channels // M)
    abc = jax.nn.softmax(abc, axis=1)
    a, b, c = abc[:, 0], abc[:, 1], abc[:, 2]
    up = a[:, :, None, None] * x1
    center = b[:, :, None, None] * x2
    down = c[:, :, None, None] * x3
    return jnp.concatenate([up, center, down], axis=2)


if __name__ == "__main__":
    B, C, H, W = 2, 4, 16, 16
    M, r, L = 3, 16, 32
    d = max(C // r, L)            # = 32
    out_channels = M * C          # = 12 (required so a*x1 broadcasts)

    key = jax.random.PRNGKey(0)
    kx, k1, k2 = jax.random.split(key, 3)
    x = jax.random.normal(kx, (B, C, H, W), dtype=jnp.float32)
    w_se = 0.1 * jax.random.normal(k1, (d, C, 1, 1), dtype=jnp.float32)
    w_fc2 = 0.1 * jax.random.normal(k2, (out_channels, d, 1, 1), dtype=jnp.float32)

    out = rir_forward(x, w_se, w_fc2, M=M)
    out = jax.block_until_ready(out)

    ref = rir_reference(x, w_se, w_fc2, M=M)
    assert out.shape == (B, C, H, W)
    # approx reciprocal in the softmax denominator costs ~1e-4 relative error
    assert jnp.allclose(out, ref, atol=2e-3, rtol=2e-3), "mismatch vs reference"

    print("KERNEL_OK")
</pallas_src>

<mosaic_0001>
module attributes {stable_mosaic.version = 11 : i64} {
  func.func @rir_kernel(%arg0: i32, %arg1: memref<8x256xf32, #tpu.memory_space<vmem>>, %arg2: memref<32x4xf32, #tpu.memory_space<vmem>>, %arg3: memref<12x32xf32, #tpu.memory_space<vmem>>, %arg4: memref<8x256xf32, #tpu.memory_space<vmem>>) attributes {dimension_semantics = [#tpu.dimension_semantics<parallel>], iteration_bounds = array<i64: 1>, scalar_prefetch = 0 : i64, scratch_operands = 0 : i64, tpu.core_type = #tpu.core_type<tc>, window_params = [{transform_indices = @transform_0, window_bounds = array<i64: 8, 256>}, {pipeline_mode = #tpu.pipeline_mode<synchronous>, transform_indices = @transform_1, window_bounds = array<i64: 32, 4>}, {pipeline_mode = #tpu.pipeline_mode<synchronous>, transform_indices = @transform_2, window_bounds = array<i64: 12, 32>}, {transform_indices = @transform_3, window_bounds = array<i64: 8, 256>}]} {
    %c0 = arith.constant 0 : index
    %c0_0 = arith.constant 0 : index
    %0 = vector.load %arg1[%c0, %c0_0] : memref<8x256xf32, #tpu.memory_space<vmem>>, vector<8x256xf32>
    %1 = tpu.iota {dimensions = array<i32: 1>} : vector<1x256xi32>
    %c80_i32 = arith.constant 80 : i32
    %2 = vector.broadcast %c80_i32 : i32 to vector<1x256xi32>
    %3 = arith.cmpi slt, %1, %2 : vector<1x256xi32>
    %c160_i32 = arith.constant 160 : i32
    %4 = vector.broadcast %c160_i32 : i32 to vector<1x256xi32>
    %5 = arith.cmpi slt, %1, %4 : vector<1x256xi32>
    %cst = arith.constant 1.250000e-02 : f32
    %cst_1 = arith.constant 0.010416667 : f32
    %6 = vector.broadcast %cst : f32 to vector<1x256xf32>
    %7 = vector.broadcast %cst_1 : f32 to vector<1x256xf32>
    %8 = arith.select %5, %6, %7 : vector<1x256xi1>, vector<1x256xf32>
    %cst_2 = arith.constant 1.250000e-02 : f32
    %9 = vector.broadcast %cst_2 : f32 to vector<1x256xf32>
    %10 = arith.select %3, %9, %8 : vector<1x256xi1>, vector<1x256xf32>
    %11 = vector.broadcast %10 : vector<1x256xf32> to vector<8x256xf32>
    %12 = arith.mulf %0, %11 : vector<8x256xf32>
    %cst_3 = arith.constant dense<0.000000e+00> : vector<8xf32>
    %13 = vector.multi_reduction <add>, %12, %cst_3 [1] : vector<8x256xf32> to vector<8xf32>
    %14 = vector.shape_cast %13 : vector<8xf32> to vector<8x1xf32>
    %c0_4 = arith.constant 0 : index
    %c0_5 = arith.constant 0 : index
    %15 = vector.load %arg2[%c0_4, %c0_5] : memref<32x4xf32, #tpu.memory_space<vmem>>, vector<32x4xf32>
    %c0_6 = arith.constant 0 : index
    %c0_7 = arith.constant 0 : index
    %16 = vector.load %arg3[%c0_6, %c0_7] : memref<12x32xf32, #tpu.memory_space<vmem>>, vector<12x32xf32>
    %17 = vector.extract_strided_slice %14 {offsets = [0, 0], sizes = [4, 1], strides = [1, 1]} : vector<8x1xf32> to vector<4x1xf32>
    %cst_8 = arith.constant dense<0.000000e+00> : vector<32x1xf32>
    %18 = tpu.matmul %15, %17, %cst_8 {dimension_numbers = #tpu.dot_dimension_numbers<[1], [0], [0], [1], [0, 0, 1, 1], [], []>} : vector<32x4xf32>, vector<4x1xf32>, vector<32x1xf32> -> vector<32x1xf32>
    %cst_9 = arith.constant 0.000000e+00 : f32
    %19 = vector.broadcast %cst_9 : f32 to vector<32x1xf32>
    %20 = arith.maximumf %18, %19 : vector<32x1xf32>
    %cst_10 = arith.constant dense<0.000000e+00> : vector<12x1xf32>
    %21 = tpu.matmul %16, %20, %cst_10 {dimension_numbers = #tpu.dot_dimension_numbers<[1], [0], [0], [1], [0, 0, 1, 1], [], []>} : vector<12x32xf32>, vector<32x1xf32>, vector<12x1xf32> -> vector<12x1xf32>
    %22 = vector.extract_strided_slice %21 {offsets = [0, 0], sizes = [4, 1], strides = [1, 1]} : vector<12x1xf32> to vector<4x1xf32>
    %23 = vector.extract_strided_slice %21 {offsets = [4, 0], sizes = [4, 1], strides = [1, 1]} : vector<12x1xf32> to vector<4x1xf32>
    %24 = vector.extract_strided_slice %21 {offsets = [8, 0], sizes = [4, 1], strides = [1, 1]} : vector<12x1xf32> to vector<4x1xf32>
    %25 = arith.maximumf %22, %23 : vector<4x1xf32>
    %26 = arith.maximumf %25, %24 : vector<4x1xf32>
    %27 = arith.subf %22, %26 : vector<4x1xf32>
    %28 = math.exp %27 : vector<4x1xf32>
    %29 = arith.subf %23, %26 : vector<4x1xf32>
    %30 = math.exp %29 : vector<4x1xf32>
    %31 = arith.subf %24, %26 : vector<4x1xf32>
    %32 = math.exp %31 : vector<4x1xf32>
    %33 = arith.addf %28, %30 : vector<4x1xf32>
    %34 = arith.addf %33, %32 : vector<4x1xf32>
    %35 = tpu.reciprocal %34 {approx = true} : vector<4x1xf32> -> vector<4x1xf32>
    %36 = arith.mulf %28, %35 : vector<4x1xf32>
    %37 = arith.mulf %30, %35 : vector<4x1xf32>
    %38 = arith.mulf %32, %35 : vector<4x1xf32>
    %39 = vector.extract_strided_slice %14 {offsets = [4, 0], sizes = [4, 1], strides = [1, 1]} : vector<8x1xf32> to vector<4x1xf32>
    %cst_11 = arith.constant dense<0.000000e+00> : vector<32x1xf32>
    %40 = tpu.matmul %15, %39, %cst_11 {dimension_numbers = #tpu.dot_dimension_numbers<[1], [0], [0], [1], [0, 0, 1, 1], [], []>} : vector<32x4xf32>, vector<4x1xf32>, vector<32x1xf32> -> vector<32x1xf32>
    %cst_12 = arith.constant 0.000000e+00 : f32
    %41 = vector.broadcast %cst_12 : f32 to vector<32x1xf32>
    %42 = arith.maximumf %40, %41 : vector<32x1xf32>
    %cst_13 = arith.constant dense<0.000000e+00> : vector<12x1xf32>
    %43 = tpu.matmul %16, %42, %cst_13 {dimension_numbers = #tpu.dot_dimension_numbers<[1], [0], [0], [1], [0, 0, 1, 1], [], []>} : vector<12x32xf32>, vector<32x1xf32>, vector<12x1xf32> -> vector<12x1xf32>
    %44 = vector.extract_strided_slice %43 {offsets = [0, 0], sizes = [4, 1], strides = [1, 1]} : vector<12x1xf32> to vector<4x1xf32>
    %45 = vector.extract_strided_slice %43 {offsets = [4, 0], sizes = [4, 1], strides = [1, 1]} : vector<12x1xf32> to vector<4x1xf32>
    %46 = vector.extract_strided_slice %43 {offsets = [8, 0], sizes = [4, 1], strides = [1, 1]} : vector<12x1xf32> to vector<4x1xf32>
    %47 = arith.maximumf %44, %45 : vector<4x1xf32>
    %48 = arith.maximumf %47, %46 : vector<4x1xf32>
    %49 = arith.subf %44, %48 : vector<4x1xf32>
    %50 = math.exp %49 : vector<4x1xf32>
    %51 = arith.subf %45, %48 : vector<4x1xf32>
    %52 = math.exp %51 : vector<4x1xf32>
    %53 = arith.subf %46, %48 : vector<4x1xf32>
    %54 = math.exp %53 : vector<4x1xf32>
    %55 = arith.addf %50, %52 : vector<4x1xf32>
    %56 = arith.addf %55, %54 : vector<4x1xf32>
    %57 = tpu.reciprocal %56 {approx = true} : vector<4x1xf32> -> vector<4x1xf32>
    %58 = arith.mulf %50, %57 : vector<4x1xf32>
    %59 = arith.mulf %52, %57 : vector<4x1xf32>
    %60 = arith.mulf %54, %57 : vector<4x1xf32>
    %61 = tpu.concatenate %36, %58 in 0 : vector<4x1xf32>, vector<4x1xf32> -> vector<8x1xf32>
    %62 = tpu.concatenate %37, %59 in 0 : vector<4x1xf32>, vector<4x1xf32> -> vector<8x1xf32>
    %63 = tpu.concatenate %38, %60 in 0 : vector<4x1xf32>, vector<4x1xf32> -> vector<8x1xf32>
    %64 = vector.shape_cast %5 : vector<1x256xi1> to vector<1x256xi1>
    %65 = vector.broadcast %64 : vector<1x256xi1> to vector<8x256xi1>
    %66 = vector.shape_cast %62 : vector<8x1xf32> to vector<8x1xf32>
    %67 = vector.broadcast %66 : vector<8x1xf32> to vector<8x256xf32>
    %68 = vector.shape_cast %63 : vector<8x1xf32> to vector<8x1xf32>
    %69 = vector.broadcast %68 : vector<8x1xf32> to vector<8x256xf32>
    %70 = arith.select %65, %67, %69 : vector<8x256xi1>, vector<8x256xf32>
    %71 = vector.shape_cast %3 : vector<1x256xi1> to vector<1x256xi1>
    %72 = vector.broadcast %71 : vector<1x256xi1> to vector<8x256xi1>
    %73 = vector.shape_cast %61 : vector<8x1xf32> to vector<8x1xf32>
    %74 = vector.broadcast %73 : vector<8x1xf32> to vector<8x256xf32>
    %75 = arith.select %72, %74, %70 : vector<8x256xi1>, vector<8x256xf32>
    %76 = arith.mulf %75, %0 : vector<8x256xf32>
    %c0_14 = arith.constant 0 : index
    %c0_15 = arith.constant 0 : index
    %77 = vector.load %arg4[%c0_14, %c0_15] : memref<8x256xf32, #tpu.memory_space<vmem>>, vector<8x256xf32>
    tpu.vector_store %arg4[%c0_14, %c0_15], %76 {strides = array<i32>} : memref<8x256xf32, #tpu.memory_space<vmem>>, vector<8x256xf32>,
    return
  }
  func.func @transform_0(%arg0: i32) -> (i32, i32) {
    %c0_i32 = arith.constant 0 : i32
    %c0_i32_0 = arith.constant 0 : i32
    return %arg0, %c0_i32 : i32, i32
  }
  func.func @transform_1(%arg0: i32) -> (i32, i32) {
    %c0_i32 = arith.constant 0 : i32
    %c0_i32_0 = arith.constant 0 : i32
    %c0_i32_1 = arith.constant 0 : i32
    return %c0_i32, %c0_i32_0 : i32, i32
  }
  func.func @transform_2(%arg0: i32) -> (i32, i32) {
    %c0_i32 = arith.constant 0 : i32
    %c0_i32_0 = arith.constant 0 : i32
    %c0_i32_1 = arith.constant 0 : i32
    return %c0_i32, %c0_i32_0 : i32, i32
  }
  func.func @transform_3(%arg0: i32) -> (i32, i32) {
    %c0_i32 = arith.constant 0 : i32
    %c0_i32_0 = arith.constant 0 : i32
    return %arg0, %c0_i32 : i32, i32
  }
}

</mosaic_0001>

<llo_original>
// kernel: tpu_custom_call.1
$region0: #{tpu_custom_call.1}
  #allocation0 [shape = 'u32[]', space=smem, size = 0x4, offset = 0x4, fixed_abs, tag = 'smem constant byte address 0x4 - core index']
  #allocation1 [shape = 'u32[72,128]{1,0:T(1,128)}', space=vmem, size = 0x9000, scoped, tag = 'internal scratch']
  %s0 = inlined_call_operand.vmem [shape: f32[8,256], index: 0, kind: input, shape index: {}]
  %s1 = inlined_call_operand.vmem [shape: f32[32,4], index: 1, kind: input, shape index: {}]
  %s2 = inlined_call_operand.vmem [shape: f32[12,32], index: 2, kind: input, shape index: {}]
  %s3 = inlined_call_operand.hbm [shape: f32[8,256], index: 3, kind: output, shape index: {}]
  %s4 = sld [smem:[#allocation0]]
  $region22: #{tpu_custom_call.1} parent=0
    _
  %s6 = ssub.s32 1, %s4
  %s7 = scalar_select 0, %s6, %s4
  $region1: #{tpu_custom_call.1} parent=0
    #allocation2 [shape = 'u8[8192]{0}', space=vmem, size = 0x2000, scoped, tag = 'output window, operand 0, single buffered']
    #allocation3 [shape = 's32[1]{0}', space=sflag, size = 0x4, scoped, tag = 'scoped memory for tpu_custom_call.1']
    %8 = vsyncpa [#allocation3], 0
    // Predicated region
    $region2: #{tpu_custom_call.1} parent=1 // pred_check
      _
    $region3: #{tpu_custom_call.1} parent=1 // pred_check_branch
      %10 = sbr.rel (0) target = $region5
    $region4: #{tpu_custom_call.1} parent=1 // pred_region
      _
    $region5: #{tpu_custom_call.1} parent=1 // pred_fallthru
      _
    // Predicated region
    $region6: #{tpu_custom_call.1} parent=1 // pred_check
      _
    $region7: #{tpu_custom_call.1} parent=1 // pred_check_branch
      %12 = sbr.rel (0) target = $region9
    $region8: #{tpu_custom_call.1} parent=1 // pred_region
      _
    $region9: #{tpu_custom_call.1} parent=1 // pred_fallthru
      _
    // Predicated region
    $region10: #{tpu_custom_call.1} parent=1 // pred_check
      _
    $region11: #{tpu_custom_call.1} parent=1 // pred_check_branch
      %14 = sbr.rel (0) target = $region13
    $region12: #{tpu_custom_call.1} parent=1 // pred_region
      _
    $region13: #{tpu_custom_call.1} parent=1 // pred_fallthru
      _
    %v15 = vld [vmem:[%s0] sm:$0xff]
    %v16 = vld [vmem:[%s0 + $0x8] sm:$0xff]
    %v17 = vlaneseq
    %v18 = vand.u32 %v17, 127
    %v19 = vadd.s32 %v18, 128
    %vm20 = vcmp.lt.s32.totalorder %v18, 80
    %vm21 = vcmp.lt.s32.totalorder %v19, 80
    %vm22 = vcmp.lt.s32.totalorder %v18, 160
    %vm23 = vcmp.lt.s32.totalorder %v19, 160
    %v24 = vsel %vm22, 0.0125, 0.010416667
    %v25 = vsel %vm23, 0.0125, 0.010416667
    %v26 = vsel %vm20, 0.0125, %v24
    %v27 = vsel %vm21, 0.0125, %v25
    %v28 = vmul.f32 %v15, %v26
    %v29 = vmul.f32 %v16, %v27
    %v30 = vadd.f32 %v28, %v29
    %31 = vadd.xlane.f32.xlu0 %v30
    %v32 = vpop.xlane.xlu0 %31
    %v33 = vld [vmem:[%s1] sm:$0xff]
    %v34 = vld [vmem:[%s1 + $0x8] sm:$0xff]
    %v35 = vld [vmem:[%s1 + $0x10] sm:$0xff]
    %v36 = vld [vmem:[%s1 + $0x18] sm:$0xff]
    %v37 = vld [vmem:[%s2] sm:$0xff]
    %v38 = vld [vmem:[%s2 + $0x8] sm:$0xf]
    %vm39 = vcmask 31744
    %v41 = vsel %vm39, %v33, 0
    %v44 = vsel %vm39, %v34, 0
    %v47 = vsel %vm39, %v35, 0
    %v50 = vsel %vm39, %v36, 0
    %vm52 = vcmask 1043456
    %v54 = vsel %vm52, %v32, 0
    %56 = vmatpush.msra.mxu0 0.0
    %57 = vmatpush.msra.mxu0 0.0
    %58 = vmatpush.msra.mxu0 0.0
    %59 = vmatpush.msra.mxu0 0.0
    %60 = vmatpush.msra.mxu0 0.0
    %61 = vmatpush.msra.mxu0 0.0
    %62 = vmatpush.msra.mxu0 0.0
    %63 = vmatpush.msra.mxu0 0.0
    %64 = vmatpush.msra.mxu0 0.0
    %65 = vmatpush.msra.mxu0 0.0
    %66 = vmatpush.msra.mxu0 0.0
    %67 = vmatpush.msra.mxu0 0.0
    %68 = vmatpush.msra.mxu0 0.0
    %69 = vmatpush.msra.mxu0 0.0
    %70 = vmatpush.msra.mxu0 0.0
    %71 = vmatpush.msra.mxu0 %v54
    %72 = vmatmul.f32.gmra.mxu0 %v41
    %v73 = vpop.f32.mrf.mxu0
    %v74 = vadd.f32 0.0, %v73
    %75 = vmatmul.f32.gmra.mxu0 %v44
    %v76 = vpop.f32.mrf.mxu0
    %v77 = vadd.f32 0.0, %v76
    %78 = vmatmul.f32.gmra.mxu0 %v47
    %v79 = vpop.f32.mrf.mxu0
    %v80 = vadd.f32 0.0, %v79
    %81 = vmatmul.f32.gmra.mxu0 %v50
    %v82 = vpop.f32.mrf.mxu0
    %v83 = vadd.f32 0.0, %v82
    %84 = vdwg.mxu0
    %v85 = vmax.f32 %v74, 0.0
    %v86 = vmax.f32 %v77, 0.0
    %v87 = vmax.f32 %v80, 0.0
    %v88 = vmax.f32 %v83, 0.0
    %vm89 = vcmask 261120
    %v91 = vsel %vm89, %v37, 0
    %v94 = vsel %vm89, %v38, 0
    %96 = vmatpush.msra.mxu0 0.0
    %97 = vmatpush.msra.mxu0 0.0
    %98 = vmatpush.msra.mxu0 0.0
    %99 = vmatpush.msra.mxu0 0.0
    %100 = vmatpush.msra.mxu0 0.0
    %101 = vmatpush.msra.mxu0 0.0
    %102 = vmatpush.msra.mxu0 0.0
    %103 = vmatpush.msra.mxu0 0.0
    %104 = vmatpush.msra.mxu0 0.0
    %105 = vmatpush.msra.mxu0 0.0
    %106 = vmatpush.msra.mxu0 0.0
    %107 = vmatpush.msra.mxu0 0.0
    %108 = vmatpush.msra.mxu0 %v88
    %109 = vmatpush.msra.mxu0 %v87
    %110 = vmatpush.msra.mxu0 %v86
    %111 = vmatpush.msra.mxu0 %v85
    %112 = vmatmul.f32.gmra.mxu0 %v91
    %v113 = vpop.f32.mrf.mxu0
    %v114 = vadd.f32 0.0, %v113
    %115 = vmatmul.f32.gmra.mxu0 %v94
    %v116 = vpop.f32.mrf.mxu0
    %v117 = vadd.f32 0.0, %v116
    %118 = vdwg.mxu0
    %v120 = vrot.slane %v114, 4
    %v122 = vmax.f32 %v114, %v120
    %v123 = vmax.f32 %v122, %v117
    %v124 = vsub.f32 %v114, %v123
    %v125 = vmul.f32 %v124, 1.442695
    %v126 = vpow.pop %v125
    %v128 = vrot.slane %v123, 4
    %v130 = vsub.f32 %v114, %v128
    %v131 = vmul.f32 %v130, 1.442695
    %v132 = vpow.pop %v131
    %v133 = vsub.f32 %v117, %v123
    %v134 = vmul.f32 %v133, 1.442695
    %v135 = vpow.pop %v134
    %v137 = vrot.slane %v132, 4
    %v139 = vadd.f32 %v126, %v137
    %v140 = vadd.f32 %v139, %v135
    %v141 = vrcp.pop %v140
    %v142 = vmul.f32 %v126, %v141
    %v144 = vrot.slane %v141, 4
    %v146 = vmul.f32 %v132, %v144
    %v147 = vmul.f32 %v135, %v141
    %v148 = vrot.slane %v32, 4
    %v149 = vsel %vm52, %v148, 0
    %151 = vmatpush.msra.mxu0 0.0
    %152 = vmatpush.msra.mxu0 0.0
    %153 = vmatpush.msra.mxu0 0.0
    %154 = vmatpush.msra.mxu0 0.0
    %155 = vmatpush.msra.mxu0 0.0
    %156 = vmatpush.msra.mxu0 0.0
    %157 = vmatpush.msra.mxu0 0.0
    %158 = vmatpush.msra.mxu0 0.0
    %159 = vmatpush.msra.mxu0 0.0
    %160 = vmatpush.msra.mxu0 0.0
    %161 = vmatpush.msra.mxu0 0.0
    %162 = vmatpush.msra.mxu0 0.0
    %163 = vmatpush.msra.mxu0 0.0
    %164 = vmatpush.msra.mxu0 0.0
    %165 = vmatpush.msra.mxu0 0.0
    %166 = vmatpush.msra.mxu0 %v149
    %167 = vmatmul.f32.gmra.mxu0 %v41
    %v168 = vpop.f32.mrf.mxu0
    %v169 = vadd.f32 0.0, %v168
    %170 = vmatmul.f32.gmra.mxu0 %v44
    %v171 = vpop.f32.mrf.mxu0
    %v172 = vadd.f32 0.0, %v171
    %173 = vmatmul.f32.gmra.mxu0 %v47
    %v174 = vpop.f32.mrf.mxu0
    %v175 = vadd.f32 0.0, %v174
    %176 = vmatmul.f32.gmra.mxu0 %v50
    %v177 = vpop.f32.mrf.mxu0
    %v178 = vadd.f32 0.0, %v177
    %179 = vdwg.mxu0
    %v180 = vmax.f32 %v169, 0.0
    %v181 = vmax.f32 %v172, 0.0
    %v182 = vmax.f32 %v175, 0.0
    %v183 = vmax.f32 %v178, 0.0
    %184 = vmatpush.msra.mxu0 0.0
    %185 = vmatpush.msra.mxu0 0.0
    %186 = vmatpush.msra.mxu0 0.0
    %187 = vmatpush.msra.mxu0 0.0
    %188 = vmatpush.msra.mxu0 0.0
    %189 = vmatpush.msra.mxu0 0.0
    %190 = vmatpush.msra.mxu0 0.0
    %191 = vmatpush.msra.mxu0 0.0
    %192 = vmatpush.msra.mxu0 0.0
    %193 = vmatpush.msra.mxu0 0.0
    %194 = vmatpush.msra.mxu0 0.0
    %195 = vmatpush.msra.mxu0 0.0
    %196 = vmatpush.msra.mxu0 %v183
    %197 = vmatpush.msra.mxu0 %v182
    %198 = vmatpush.msra.mxu0 %v181
    %199 = vmatpush.msra.mxu0 %v180
    %200 = vmatmul.f32.gmra.mxu0 %v91
    %v201 = vpop.f32.mrf.mxu0
    %v202 = vadd.f32 0.0, %v201
    %203 = vmatmul.f32.gmra.mxu0 %v94
    %v204 = vpop.f32.mrf.mxu0
    %v205 = vadd.f32 0.0, %v204
    %206 = vdwg.mxu0
    %v208 = vrot.slane %v202, 4
    %v210 = vmax.f32 %v202, %v208
    %v211 = vmax.f32 %v210, %v205
    %v212 = vsub.f32 %v202, %v211
    %v213 = vmul.f32 %v212, 1.442695
    %v214 = vpow.pop %v213
    %v216 = vrot.slane %v211, 4
    %v218 = vsub.f32 %v202, %v216
    %v219 = vmul.f32 %v218, 1.442695
    %v220 = vpow.pop %v219
    %v221 = vsub.f32 %v205, %v211
    %v222 = vmul.f32 %v221, 1.442695
    %v223 = vpow.pop %v222
    %v225 = vrot.slane %v220, 4
    %v227 = vadd.f32 %v214, %v225
    %v228 = vadd.f32 %v227, %v223
    %v229 = vrcp.pop %v228
    %v230 = vmul.f32 %v214, %v229
    %v232 = vrot.slane %v229, 4
    %v234 = vmul.f32 %v220, %v232
    %v235 = vmul.f32 %v223, %v229
    %v237 = vrot.slane %v230, 4
    %v239 = vsel %vm52, %v142, %v237
    %v241 = vrot.slane %v146, 4
    %v243 = vsel %vm52, %v241, %v234
    %v245 = vrot.slane %v235, 4
    %v247 = vsel %vm52, %v147, %v245
    %v248 = vsel %vm22, 1, 0
    %v249 = vsel %vm23, 1, 0
    %vm250 = vcmp.eq.s32.totalorder %v248, 1
    %vm251 = vcmp.eq.s32.totalorder %v249, 1
    %253 = vset.pattern.permute.xlu0 0
    %254 = vperm.xlu0 %253, %v243
    %v255 = vpop.permute.xlu0 %254
    %258 = vset.pattern.permute.xlu0 0
    %259 = vperm.xlu0 %258, %v247
    %v260 = vpop.permute.xlu0 %259
    %v262 = vsel %vm250, %v255, %v260
    %v263 = vsel %vm251, %v255, %v260
    %v264 = vsel %vm20, 1, 0
    %v265 = vsel %vm21, 1, 0
    %vm266 = vcmp.eq.s32.totalorder %v264, 1
    %vm267 = vcmp.eq.s32.totalorder %v265, 1
    %269 = vset.pattern.permute.xlu0 0
    %270 = vperm.xlu0 %269, %v239
    %v271 = vpop.permute.xlu0 %270
    %v273 = vsel %vm266, %v271, %v262
    %v274 = vsel %vm267, %v271, %v263
    %v275 = vmul.f32 %v273, %v15
    %v276 = vmul.f32 %v274, %v16
    %277 = vst [vmem:[#allocation2] sm:$0xff] %v275
    %278 = vst [vmem:[#allocation2 + $0x8] sm:$0xff] %v276
    // Predicated region
    $region14: #{tpu_custom_call.1} parent=1 // pred_check
      _
    $region15: #{tpu_custom_call.1} parent=1 // pred_check_branch
      %280 = sbr.rel (0) target = $region17
    $region16: #{tpu_custom_call.1} parent=1 // pred_region
      %282 = vsyncadd [#allocation3], 0
      %s284 = sshll.u32 [#allocation2], 4
      %s285 = int_to_ptr.vmem [resolvable:$true] %s284
      %s286 = sshll.u32 %s3, 4
      %s287 = int_to_ptr.hbm [resolvable:$true] %s286
      %289 = dma.vmem_to_hbm [thread:$0]  %s285, 256, %s287, [#allocation3]
    $region17: #{tpu_custom_call.1} parent=1 // pred_fallthru
      _
    // Predicated region
    $region18: #{tpu_custom_call.1} parent=1 // pred_check
      _
    $region19: #{tpu_custom_call.1} parent=1 // pred_check_branch
      %291 = sbr.rel (0) target = $region21
    $region20: #{tpu_custom_call.1} parent=1 // pred_region
      %293 = dma.done [#allocation3], 256
    $region21: #{tpu_custom_call.1} parent=1 // pred_fallthru
      _
    %294 = vsyncpa [#allocation3], 1

</llo_original>
